<compile_context>
chip_gen: v7x
topology: tpu7x:2x2x1
jax: 0.10.0
libtpu: 0.0.40
codegen_flags: <defaults>
</compile_context>

<pallas_src>
import functools

import jax
import jax.numpy as jnp
from jax.experimental import pallas as pl
from jax.experimental.pallas import tpu as pltpu


HIDDEN = 30          # fixed by the PyTorch module
LANE = 128           # TPU vreg lane width
_SUBLANE = 8         # TPU vreg sublane count
# keep double-buffered streaming blocks (x tile + out tile) under this budget
_VMEM_BLOCK_BUDGET = 16 * 1024 * 1024


def _round_up(x, m):
    return ((x + m - 1) // m) * m


def _mlp_kernel(x_ref, w1_ref, b1_ref, w2_ref, b2_ref, o_ref):
    # x_ref : (tb, in_dim)            batch tile, streamed over the grid
    # w1_ref: (in_dim, hid_pad)       VMEM-resident (constant index_map)
    # b1_ref: (1, hid_pad)            VMEM-resident
    # w2_ref: (hid_pad, nb_action)    VMEM-resident (padded rows are zero)
    # b2_ref: (1, nb_action)          VMEM-resident
    # o_ref : (tb, nb_action)         unpadded output tile
    h = jnp.dot(x_ref[...], w1_ref[...], preferred_element_type=jnp.float32)
    h = jnp.maximum(h + b1_ref[...], 0.0)                       # F.relu(fc1(x))
    q = jnp.dot(h, w2_ref[...], preferred_element_type=jnp.float32) + b2_ref[...]
    o_ref[...] = q.astype(o_ref.dtype)                          # fc2(h)


def prepare_params(w1, b1, w2, b2, dtype=jnp.float32):
    """One-time padding of the parameters (hidden dim -> 128 lanes).

    Call this once per parameter update (NOT per forward pass) and reuse the
    result; this keeps the small scatter/pad XLA ops off the hot path.
    """
    in_dim, hid = w1.shape
    nb_action = w2.shape[1]
    hid_pad = _round_up(hid, LANE)
    w1_pad = jnp.zeros((in_dim, hid_pad), dtype).at[:, :hid].set(w1.astype(dtype))
    b1_pad = jnp.zeros((1, hid_pad), dtype).at[:, :hid].set(b1.astype(dtype))
    w2_pad = jnp.zeros((hid_pad, nb_action), dtype).at[:hid, :].set(w2.astype(dtype))
    b2_pad = b2.reshape(1, nb_action).astype(dtype)
    return w1_pad, b1_pad, w2_pad, b2_pad


@functools.partial(jax.jit, static_argnames=("block_b",))
def network_forward(state, w1_pad, b1_pad, w2_pad, b2_pad, *, block_b=2048):
    """Q-values = fc2(relu(fc1(state))). All compute inside one Pallas kernel.

    state: (B, input_size) f32
    w1_pad/b1_pad/w2_pad/b2_pad: output of prepare_params().
    """
    B, in_dim = state.shape
    hid_pad = w1_pad.shape[1]
    nb_action = w2_pad.shape[1]
    dtype = state.dtype

    # --- batch tiling ---------------------------------------------------
    # Single grid step when the whole batch fits in one tile (common RL case);
    # otherwise block_b-row tiles. Cap so double-buffered streaming blocks
    # stay well inside scoped VMEM on all generations (v7x: 32 MiB default).
    tb = _round_up(min(block_b, B), _SUBLANE)
    bytes_per_row = (in_dim + nb_action) * jnp.dtype(dtype).itemsize
    vmem_rows = max(
        _SUBLANE,
        (_VMEM_BLOCK_BUDGET // (2 * bytes_per_row)) // _SUBLANE * _SUBLANE,
    )
    tb = min(tb, vmem_rows)
    b_pad = _round_up(B, tb)
    if b_pad != B:
        state = jnp.pad(state, ((0, b_pad - B), (0, 0)))
    grid = (b_pad // tb,)

    out = pl.pallas_call(
        _mlp_kernel,
        out_shape=jax.ShapeDtypeStruct((b_pad, nb_action), dtype),
        grid_spec=pltpu.PrefetchScalarGridSpec(
            num_scalar_prefetch=0,
            grid=grid,
            in_specs=[
                # activations stream block-by-block over the batch
                pl.BlockSpec((tb, in_dim), lambda i: (i, 0)),
                # weights / biases: same block every step -> VMEM-resident
                pl.BlockSpec((in_dim, hid_pad), lambda i: (0, 0)),
                pl.BlockSpec((1, hid_pad), lambda i: (0, 0)),
                pl.BlockSpec((hid_pad, nb_action), lambda i: (0, 0)),
                pl.BlockSpec((1, nb_action), lambda i: (0, 0)),
            ],
            # unpadded output: last block dim equals the full array dim (legal);
            # a few masked stores beat 128-lane padded HBM writeback.
            out_specs=pl.BlockSpec((tb, nb_action), lambda i: (i, 0)),
        ),
        compiler_params=pltpu.CompilerParams(
            dimension_semantics=("parallel",),   # megacore split on v7x
        ),
    )(state, w1_pad, b1_pad, w2_pad, b2_pad)

    # strip batch padding (no-op slice when B is already tile-aligned)
    return out[:B]


def init_params(key, input_size, nb_action):
    """Deterministic init matching nn.Linear's default U(-1/sqrt(fan_in), ...)."""
    k1, k2, k3, k4 = jax.random.split(key, 4)
    bound1 = 1.0 / jnp.sqrt(jnp.float32(input_size))
    bound2 = 1.0 / jnp.sqrt(jnp.float32(HIDDEN))
    # stored as (in, out) — transpose of PyTorch's (out, in) weight layout
    w1 = jax.random.uniform(k1, (input_size, HIDDEN), jnp.float32, -bound1, bound1)
    b1 = jax.random.uniform(k2, (HIDDEN,), jnp.float32, -bound1, bound1)
    w2 = jax.random.uniform(k3, (HIDDEN, nb_action), jnp.float32, -bound2, bound2)
    b2 = jax.random.uniform(k4, (nb_action,), jnp.float32, -bound2, bound2)
    return w1, b1, w2, b2


if __name__ == "__main__":
    # The original agent uses input_size=5 (3 sensor signals + orientation,
    # -orientation) and nb_action=3. batch=256 fits a single grid step with
    # the default block_b, so there is no per-step overhead to amortize.
    input_size = 5
    nb_action = 3
    batch = 256

    key = jax.random.PRNGKey(0)
    k_state, k_params = jax.random.split(key)
    state = jax.random.normal(k_state, (batch, input_size), dtype=jnp.float32)
    w1, b1, w2, b2 = init_params(k_params, input_size, nb_action)

    # pad/prepare parameters ONCE; reuse across forward calls
    params = prepare_params(w1, b1, w2, b2)

    q_values = network_forward(state, *params)
    q_values = jax.block_until_ready(q_values)

    # exercise the tiny-batch (select_action style) path too
    q1 = jax.block_until_ready(network_forward(state[:1], *params))

    # sanity check against plain-JAX reference (unpadded, explicit biases)
    ref = jnp.maximum(state @ w1 + b1, 0.0) @ w2 + b2
    assert q_values.shape == (batch, nb_action)
    assert jnp.allclose(q_values, ref, atol=1e-4, rtol=1e-4), "mismatch vs reference"
    assert jnp.allclose(q1, ref[:1], atol=1e-4, rtol=1e-4), "batch-1 mismatch"

    print("KERNEL_OK")
</pallas_src>

<mosaic_0001>
module attributes {stable_mosaic.version = 11 : i64} {
  func.func @_mlp_kernel(%arg0: i32, %arg1: memref<256x5xf32, #tpu.memory_space<vmem>>, %arg2: memref<5x128xf32, #tpu.memory_space<vmem>>, %arg3: memref<1x128xf32, #tpu.memory_space<vmem>>, %arg4: memref<128x3xf32, #tpu.memory_space<vmem>>, %arg5: memref<1x3xf32, #tpu.memory_space<vmem>>, %arg6: memref<256x3xf32, #tpu.memory_space<vmem>>) attributes {dimension_semantics = [#tpu.dimension_semantics<parallel>], iteration_bounds = array<i64: 1>, scalar_prefetch = 0 : i64, scratch_operands = 0 : i64, tpu.core_type = #tpu.core_type<tc>, window_params = [{transform_indices = @transform_0, window_bounds = array<i64: 256, 5>}, {pipeline_mode = #tpu.pipeline_mode<synchronous>, transform_indices = @transform_1, window_bounds = array<i64: 5, 128>}, {pipeline_mode = #tpu.pipeline_mode<synchronous>, transform_indices = @transform_2, window_bounds = array<i64: 1, 128>}, {pipeline_mode = #tpu.pipeline_mode<synchronous>, transform_indices = @transform_3, window_bounds = array<i64: 128, 3>}, {pipeline_mode = #tpu.pipeline_mode<synchronous>, transform_indices = @transform_4, window_bounds = array<i64: 1, 3>}, {transform_indices = @transform_5, window_bounds = array<i64: 256, 3>}]} {
    %c0 = arith.constant 0 : index
    %c0_0 = arith.constant 0 : index
    %0 = vector.load %arg1[%c0, %c0_0] : memref<256x5xf32, #tpu.memory_space<vmem>>, vector<256x5xf32>
    %c0_1 = arith.constant 0 : index
    %c0_2 = arith.constant 0 : index
    %1 = vector.load %arg2[%c0_1, %c0_2] : memref<5x128xf32, #tpu.memory_space<vmem>>, vector<5x128xf32>
    %cst = arith.constant dense<0.000000e+00> : vector<256x128xf32>
    %2 = tpu.matmul %0, %1, %cst {dimension_numbers = #tpu.dot_dimension_numbers<[1], [0], [0], [1], [0, 0, 1, 1], [], []>} : vector<256x5xf32>, vector<5x128xf32>, vector<256x128xf32> -> vector<256x128xf32>
    %c0_3 = arith.constant 0 : index
    %c0_4 = arith.constant 0 : index
    %3 = vector.load %arg3[%c0_3, %c0_4] : memref<1x128xf32, #tpu.memory_space<vmem>>, vector<1x128xf32>
    %4 = vector.broadcast %3 : vector<1x128xf32> to vector<256x128xf32>
    %5 = arith.addf %2, %4 : vector<256x128xf32>
    %cst_5 = arith.constant 0.000000e+00 : f32
    %6 = vector.broadcast %cst_5 : f32 to vector<256x128xf32>
    %7 = arith.maximumf %5, %6 : vector<256x128xf32>
    %c0_6 = arith.constant 0 : index
    %c0_7 = arith.constant 0 : index
    %8 = vector.load %arg4[%c0_6, %c0_7] : memref<128x3xf32, #tpu.memory_space<vmem>>, vector<128x3xf32>
    %cst_8 = arith.constant dense<0.000000e+00> : vector<256x3xf32>
    %9 = tpu.matmul %7, %8, %cst_8 {dimension_numbers = #tpu.dot_dimension_numbers<[1], [0], [0], [1], [0, 0, 1, 1], [], []>} : vector<256x128xf32>, vector<128x3xf32>, vector<256x3xf32> -> vector<256x3xf32>
    %c0_9 = arith.constant 0 : index
    %c0_10 = arith.constant 0 : index
    %10 = vector.load %arg5[%c0_9, %c0_10] : memref<1x3xf32, #tpu.memory_space<vmem>>, vector<1x3xf32>
    %11 = vector.broadcast %10 : vector<1x3xf32> to vector<256x3xf32>
    %12 = arith.addf %9, %11 : vector<256x3xf32>
    %c0_11 = arith.constant 0 : index
    %c0_12 = arith.constant 0 : index
    %13 = vector.load %arg6[%c0_11, %c0_12] : memref<256x3xf32, #tpu.memory_space<vmem>>, vector<256x3xf32>
    tpu.vector_store %arg6[%c0_11, %c0_12], %12 {strides = array<i32>} : memref<256x3xf32, #tpu.memory_space<vmem>>, vector<256x3xf32>,
    return
  }
  func.func @transform_0(%arg0: i32) -> (i32, i32) {
    %c0_i32 = arith.constant 0 : i32
    %c0_i32_0 = arith.constant 0 : i32
    return %arg0, %c0_i32 : i32, i32
  }
  func.func @transform_1(%arg0: i32) -> (i32, i32) {
    %c0_i32 = arith.constant 0 : i32
    %c0_i32_0 = arith.constant 0 : i32
    %c0_i32_1 = arith.constant 0 : i32
    return %c0_i32, %c0_i32_0 : i32, i32
  }
  func.func @transform_2(%arg0: i32) -> (i32, i32) {
    %c0_i32 = arith.constant 0 : i32
    %c0_i32_0 = arith.constant 0 : i32
    %c0_i32_1 = arith.constant 0 : i32
    return %c0_i32, %c0_i32_0 : i32, i32
  }
  func.func @transform_3(%arg0: i32) -> (i32, i32) {
    %c0_i32 = arith.constant 0 : i32
    %c0_i32_0 = arith.constant 0 : i32
    %c0_i32_1 = arith.constant 0 : i32
    return %c0_i32, %c0_i32_0 : i32, i32
  }
  func.func @transform_4(%arg0: i32) -> (i32, i32) {
    %c0_i32 = arith.constant 0 : i32
    %c0_i32_0 = arith.constant 0 : i32
    %c0_i32_1 = arith.constant 0 : i32
    return %c0_i32, %c0_i32_0 : i32, i32
  }
  func.func @transform_5(%arg0: i32) -> (i32, i32) {
    %c0_i32 = arith.constant 0 : i32
    %c0_i32_0 = arith.constant 0 : i32
    return %arg0, %c0_i32 : i32, i32
  }
}

</mosaic_0001>

<llo_original>
// kernel: network_forward.1
$region0: #{network_forward.1}
  #allocation0 [shape = 'u32[]', space=smem, size = 0x4, offset = 0x4, fixed_abs, tag = 'smem constant byte address 0x4 - core index']
  #allocation1 [shape = 'u32[144,128]{1,0:T(1,128)}', space=vmem, size = 0x12000, scoped, tag = 'internal scratch']
  %s0 = inlined_call_operand.vmem [shape: f32[256,5], index: 0, kind: input, shape index: {}]
  %s1 = inlined_call_operand.vmem [shape: f32[5,128], index: 1, kind: input, shape index: {}]
  %s2 = inlined_call_operand.vmem [shape: f32[1,128], index: 2, kind: input, shape index: {}]
  %s3 = inlined_call_operand.vmem [shape: f32[128,3], index: 3, kind: input, shape index: {}]
  %s4 = inlined_call_operand.vmem [shape: f32[1,3], index: 4, kind: input, shape index: {}]
  %s5 = inlined_call_operand.vmem [shape: f32[256,3], index: 5, kind: output, shape index: {}]
  %s6 = sld [smem:[#allocation0]]
  $region30: #{network_forward.1} parent=0
    _
  %s8 = ssub.s32 1, %s6
  %s9 = scalar_select 0, %s8, %s6
  // Predicated region
  $region2: #{network_forward.1} parent=0 // pred_check
    _
  $region3: #{network_forward.1} parent=0 // pred_check_branch
    %11 = sbr.rel (0) target = $region5
  $region4: #{network_forward.1} parent=0 // pred_region
    _
  $region5: #{network_forward.1} parent=0 // pred_fallthru
    _
  // Predicated region
  $region6: #{network_forward.1} parent=0 // pred_check
    _
  $region7: #{network_forward.1} parent=0 // pred_check_branch
    %13 = sbr.rel (0) target = $region9
  $region8: #{network_forward.1} parent=0 // pred_region
    _
  $region9: #{network_forward.1} parent=0 // pred_fallthru
    _
  // Predicated region
  $region10: #{network_forward.1} parent=0 // pred_check
    _
  $region11: #{network_forward.1} parent=0 // pred_check_branch
    %15 = sbr.rel (0) target = $region13
  $region12: #{network_forward.1} parent=0 // pred_region
    _
  $region13: #{network_forward.1} parent=0 // pred_fallthru
    _
  // Predicated region
  $region14: #{network_forward.1} parent=0 // pred_check
    _
  $region15: #{network_forward.1} parent=0 // pred_check_branch
    %17 = sbr.rel (0) target = $region17
  $region16: #{network_forward.1} parent=0 // pred_region
    _
  $region17: #{network_forward.1} parent=0 // pred_fallthru
    _
  // Predicated region
  $region18: #{network_forward.1} parent=0 // pred_check
    _
  $region19: #{network_forward.1} parent=0 // pred_check_branch
    %19 = sbr.rel (0) target = $region21
  $region20: #{network_forward.1} parent=0 // pred_region
    _
  $region21: #{network_forward.1} parent=0 // pred_fallthru
    _
  %v20 = vld [vmem:[%s0] sm:$0xff]
  %v21 = vld [vmem:[%s0 + $0x8] sm:$0xff]
  %v22 = vld [vmem:[%s0 + $0x10] sm:$0xff]
  %v23 = vld [vmem:[%s0 + $0x18] sm:$0xff]
  %v24 = vld [vmem:[%s0 + $0x20] sm:$0xff]
  %v25 = vld [vmem:[%s0 + $0x28] sm:$0xff]
  %v26 = vld [vmem:[%s0 + $0x30] sm:$0xff]
  %v27 = vld [vmem:[%s0 + $0x38] sm:$0xff]
  %v28 = vld [vmem:[%s0 + $0x40] sm:$0xff]
  %v29 = vld [vmem:[%s0 + $0x48] sm:$0xff]
  %v30 = vld [vmem:[%s0 + $0x50] sm:$0xff]
  %v31 = vld [vmem:[%s0 + $0x58] sm:$0xff]
  %v32 = vld [vmem:[%s0 + $0x60] sm:$0xff]
  %v33 = vld [vmem:[%s0 + $0x68] sm:$0xff]
  %v34 = vld [vmem:[%s0 + $0x70] sm:$0xff]
  %v35 = vld [vmem:[%s0 + $0x78] sm:$0xff]
  %v36 = vld [vmem:[%s0 + $0x80] sm:$0xff]
  %v37 = vld [vmem:[%s0 + $0x88] sm:$0xff]
  %v38 = vld [vmem:[%s0 + $0x90] sm:$0xff]
  %v39 = vld [vmem:[%s0 + $0x98] sm:$0xff]
  %v40 = vld [vmem:[%s0 + $0xa0] sm:$0xff]
  %v41 = vld [vmem:[%s0 + $0xa8] sm:$0xff]
  %v42 = vld [vmem:[%s0 + $0xb0] sm:$0xff]
  %v43 = vld [vmem:[%s0 + $0xb8] sm:$0xff]
  %v44 = vld [vmem:[%s0 + $0xc0] sm:$0xff]
  %v45 = vld [vmem:[%s0 + $0xc8] sm:$0xff]
  %v46 = vld [vmem:[%s0 + $0xd0] sm:$0xff]
  %v47 = vld [vmem:[%s0 + $0xd8] sm:$0xff]
  %v48 = vld [vmem:[%s0 + $0xe0] sm:$0xff]
  %v49 = vld [vmem:[%s0 + $0xe8] sm:$0xff]
  %v50 = vld [vmem:[%s0 + $0xf0] sm:$0xff]
  %v51 = vld [vmem:[%s0 + $0xf8] sm:$0xff]
  %v52 = vld [vmem:[%s1] sm:$0x1f]
  %v53 = vld [vmem:[%s2] sm:$0x1]
  %v55 = vlaneseq
  %v56 = vshrl.u32 %v55, 7
  %v57 = vsub.s32 0, %v56
  %v58 = vrot.slane %v53, %v57
  %vm60 = vcmask 39936
  %v62 = vsel %vm60, %v20, 0
  %v65 = vsel %vm60, %v21, 0
  %v68 = vsel %vm60, %v22, 0
  %v71 = vsel %vm60, %v23, 0
  %v74 = vsel %vm60, %v24, 0
  %v77 = vsel %vm60, %v25, 0
  %v80 = vsel %vm60, %v26, 0
  %v83 = vsel %vm60, %v27, 0
  %v86 = vsel %vm60, %v28, 0
  %v89 = vsel %vm60, %v29, 0
  %v92 = vsel %vm60, %v30, 0
  %v95 = vsel %vm60, %v31, 0
  %v98 = vsel %vm60, %v32, 0
  %v101 = vsel %vm60, %v33, 0
  %v104 = vsel %vm60, %v34, 0
  %v107 = vsel %vm60, %v35, 0
  %v110 = vsel %vm60, %v36, 0
  %v113 = vsel %vm60, %v37, 0
  %v116 = vsel %vm60, %v38, 0
  %v119 = vsel %vm60, %v39, 0
  %v122 = vsel %vm60, %v40, 0
  %v125 = vsel %vm60, %v41, 0
  %v128 = vsel %vm60, %v42, 0
  %v131 = vsel %vm60, %v43, 0
  %v134 = vsel %vm60, %v44, 0
  %v137 = vsel %vm60, %v45, 0
  %v140 = vsel %vm60, %v46, 0
  %v143 = vsel %vm60, %v47, 0
  %v146 = vsel %vm60, %v48, 0
  %v149 = vsel %vm60, %v49, 0
  %v152 = vsel %vm60, %v50, 0
  %v155 = vsel %vm60, %v51, 0
  %vm157 = vcmask 1044480
  %v159 = vsel %vm157, %v52, 0
  %161 = vmatprep.subr.mxu0 0.0
  %162 = vmatpush1.msra.mxu0 %v159
  %163 = vmatprep.subr.mxu0 0.0
  %164 = vmatpush1.msra.mxu0 0.0
  %165 = vmatprep.subr.mxu0 0.0
  %166 = vmatpush1.msra.mxu0 0.0
  %167 = vmatprep.subr.mxu0 0.0
  %168 = vmatpush1.msra.mxu0 0.0
  %169 = vmatprep.subr.mxu0 0.0
  %170 = vmatpush1.msra.mxu0 0.0
  %171 = vmatprep.subr.mxu0 0.0
  %172 = vmatpush1.msra.mxu0 0.0
  %173 = vmatprep.subr.mxu0 0.0
  %174 = vmatpush1.msra.mxu0 0.0
  %175 = vmatprep.subr.mxu0 0.0
  %176 = vmatpush1.msra.mxu0 0.0
  %177 = vmatprep.subr.mxu0 0.0
  %178 = vmatpush1.msra.mxu0 0.0
  %179 = vmatprep.subr.mxu0 0.0
  %180 = vmatpush1.msra.mxu0 0.0
  %181 = vmatprep.subr.mxu0 0.0
  %182 = vmatpush1.msra.mxu0 0.0
  %183 = vmatprep.subr.mxu0 0.0
  %184 = vmatpush1.msra.mxu0 0.0
  %185 = vmatprep.subr.mxu0 0.0
  %186 = vmatpush1.msra.mxu0 0.0
  %187 = vmatprep.subr.mxu0 0.0
  %188 = vmatpush1.msra.mxu0 0.0
  %189 = vmatprep.subr.mxu0 0.0
  %190 = vmatpush1.msra.mxu0 0.0
  %191 = vmatprep.subr.mxu0 0.0
  %192 = vmatpush1.msra.mxu0 0.0
  %193 = vmatprep.subr.mxu0 0.0
  %194 = vmatpush1.msra.mxu0 0.0
  %195 = vmatprep.subr.mxu0 0.0
  %196 = vmatpush1.msra.mxu0 0.0
  %197 = vmatprep.subr.mxu0 0.0
  %198 = vmatpush1.msra.mxu0 0.0
  %199 = vmatprep.subr.mxu0 0.0
  %200 = vmatpush1.msra.mxu0 0.0
  %201 = vmatprep.subr.mxu0 0.0
  %202 = vmatpush1.msra.mxu0 0.0
  %203 = vmatprep.subr.mxu0 0.0
  %204 = vmatpush1.msra.mxu0 0.0
  %205 = vmatprep.subr.mxu0 0.0
  %206 = vmatpush1.msra.mxu0 0.0
  %207 = vmatprep.subr.mxu0 0.0
  %208 = vmatpush1.msra.mxu0 0.0
  %209 = vmatprep.subr.mxu0 0.0
  %210 = vmatpush1.msra.mxu0 0.0
  %211 = vmatprep.subr.mxu0 0.0
  %212 = vmatpush1.msra.mxu0 0.0
  %213 = vmatprep.subr.mxu0 0.0
  %214 = vmatpush1.msra.mxu0 0.0
  %215 = vmatprep.subr.mxu0 0.0
  %216 = vmatpush1.msra.mxu0 0.0
  %217 = vmatprep.subr.mxu0 0.0
  %218 = vmatpush1.msra.mxu0 0.0
  %219 = vmatprep.subr.mxu0 0.0
  %220 = vmatpush1.msra.mxu0 0.0
  %221 = vmatprep.subr.mxu0 0.0
  %222 = vmatpush1.msra.mxu0 0.0
  %223 = vmatprep.subr.mxu0 0.0
  %224 = vmatpush1.msra.mxu0 0.0
  %225 = vmatprep.mubr.f32.mxu0 0.0
  %226 = vmatmul.mubr.f32.gmra.mrb[0].mxu0 %v62
  %v227 = vpop.f32.mrb[0].mxu0
  %v228 = vadd.f32 %v58, %v227
  %v229 = vpop.f32.mrb[0].mxu0
  %230 = vmatprep.mubr.f32.mxu0 0.0
  %231 = vmatmul.mubr.f32.gmra.mrb[0].mxu0 %v65
  %v232 = vpop.f32.mrb[0].mxu0
  %v233 = vadd.f32 %v58, %v232
  %v234 = vpop.f32.mrb[0].mxu0
  %235 = vmatprep.mubr.f32.mxu0 0.0
  %236 = vmatmul.mubr.f32.gmra.mrb[0].mxu0 %v68
  %v237 = vpop.f32.mrb[0].mxu0
  %v238 = vadd.f32 %v58, %v237
  %v239 = vpop.f32.mrb[0].mxu0
  %240 = vmatprep.mubr.f32.mxu0 0.0
  %241 = vmatmul.mubr.f32.gmra.mrb[0].mxu0 %v71
  %v242 = vpop.f32.mrb[0].mxu0
  %v243 = vadd.f32 %v58, %v242
  %v244 = vpop.f32.mrb[0].mxu0
  %245 = vmatprep.mubr.f32.mxu0 0.0
  %246 = vmatmul.mubr.f32.gmra.mrb[0].mxu0 %v74
  %v247 = vpop.f32.mrb[0].mxu0
  %v248 = vadd.f32 %v58, %v247
  %v249 = vpop.f32.mrb[0].mxu0
  %250 = vmatprep.mubr.f32.mxu0 0.0
  %251 = vmatmul.mubr.f32.gmra.mrb[0].mxu0 %v77
  %v252 = vpop.f32.mrb[0].mxu0
  %v253 = vadd.f32 %v58, %v252
  %v254 = vpop.f32.mrb[0].mxu0
  %255 = vmatprep.mubr.f32.mxu0 0.0
  %256 = vmatmul.mubr.f32.gmra.mrb[0].mxu0 %v80
  %v257 = vpop.f32.mrb[0].mxu0
  %v258 = vadd.f32 %v58, %v257
  %v259 = vpop.f32.mrb[0].mxu0
  %260 = vmatprep.mubr.f32.mxu0 0.0
  %261 = vmatmul.mubr.f32.gmra.mrb[0].mxu0 %v83
  %v262 = vpop.f32.mrb[0].mxu0
  %v263 = vadd.f32 %v58, %v262
  %v264 = vpop.f32.mrb[0].mxu0
  %265 = vmatprep.mubr.f32.mxu0 0.0
  %266 = vmatmul.mubr.f32.gmra.mrb[0].mxu0 %v86
  %v267 = vpop.f32.mrb[0].mxu0
  %v268 = vadd.f32 %v58, %v267
  %v269 = vpop.f32.mrb[0].mxu0
  %270 = vmatprep.mubr.f32.mxu0 0.0
  %271 = vmatmul.mubr.f32.gmra.mrb[0].mxu0 %v89
  %v272 = vpop.f32.mrb[0].mxu0
  %v273 = vadd.f32 %v58, %v272
  %v274 = vpop.f32.mrb[0].mxu0
  %275 = vmatprep.mubr.f32.mxu0 0.0
  %276 = vmatmul.mubr.f32.gmra.mrb[0].mxu0 %v92
  %v277 = vpop.f32.mrb[0].mxu0
  %v278 = vadd.f32 %v58, %v277
  %v279 = vpop.f32.mrb[0].mxu0
  %280 = vmatprep.mubr.f32.mxu0 0.0
  %281 = vmatmul.mubr.f32.gmra.mrb[0].mxu0 %v95
  %v282 = vpop.f32.mrb[0].mxu0
  %v283 = vadd.f32 %v58, %v282
  %v284 = vpop.f32.mrb[0].mxu0
  %285 = vmatprep.mubr.f32.mxu0 0.0
  %286 = vmatmul.mubr.f32.gmra.mrb[0].mxu0 %v98
  %v287 = vpop.f32.mrb[0].mxu0
  %v288 = vadd.f32 %v58, %v287
  %v289 = vpop.f32.mrb[0].mxu0
  %290 = vmatprep.mubr.f32.mxu0 0.0
  %291 = vmatmul.mubr.f32.gmra.mrb[0].mxu0 %v101
  %v292 = vpop.f32.mrb[0].mxu0
  %v293 = vadd.f32 %v58, %v292
  %v294 = vpop.f32.mrb[0].mxu0
  %295 = vmatprep.mubr.f32.mxu0 0.0
  %296 = vmatmul.mubr.f32.gmra.mrb[0].mxu0 %v104
  %v297 = vpop.f32.mrb[0].mxu0
  %v298 = vadd.f32 %v58, %v297
  %v299 = vpop.f32.mrb[0].mxu0
  %300 = vmatprep.mubr.f32.mxu0 0.0
  %301 = vmatmul.mubr.f32.gmra.mrb[0].mxu0 %v107
  %v302 = vpop.f32.mrb[0].mxu0
  %v303 = vadd.f32 %v58, %v302
  %v304 = vpop.f32.mrb[0].mxu0
  %305 = vmatprep.mubr.f32.mxu0 0.0
  %306 = vmatmul.mubr.f32.gmra.mrb[0].mxu0 %v110
  %v307 = vpop.f32.mrb[0].mxu0
  %v308 = vadd.f32 %v58, %v307
  %v309 = vpop.f32.mrb[0].mxu0
  %310 = vmatprep.mubr.f32.mxu0 0.0
  %311 = vmatmul.mubr.f32.gmra.mrb[0].mxu0 %v113
  %v312 = vpop.f32.mrb[0].mxu0
  %v313 = vadd.f32 %v58, %v312
  %v314 = vpop.f32.mrb[0].mxu0
  %315 = vmatprep.mubr.f32.mxu0 0.0
  %316 = vmatmul.mubr.f32.gmra.mrb[0].mxu0 %v116
  %v317 = vpop.f32.mrb[0].mxu0
  %v318 = vadd.f32 %v58, %v317
  %v319 = vpop.f32.mrb[0].mxu0
  %320 = vmatprep.mubr.f32.mxu0 0.0
  %321 = vmatmul.mubr.f32.gmra.mrb[0].mxu0 %v119
  %v322 = vpop.f32.mrb[0].mxu0
  %v323 = vadd.f32 %v58, %v322
  %v324 = vpop.f32.mrb[0].mxu0
  %325 = vmatprep.mubr.f32.mxu0 0.0
  %326 = vmatmul.mubr.f32.gmra.mrb[0].mxu0 %v122
  %v327 = vpop.f32.mrb[0].mxu0
  %v328 = vadd.f32 %v58, %v327
  %v329 = vpop.f32.mrb[0].mxu0
  %330 = vmatprep.mubr.f32.mxu0 0.0
  %331 = vmatmul.mubr.f32.gmra.mrb[0].mxu0 %v125
  %v332 = vpop.f32.mrb[0].mxu0
  %v333 = vadd.f32 %v58, %v332
  %v334 = vpop.f32.mrb[0].mxu0
  %335 = vmatprep.mubr.f32.mxu0 0.0
  %336 = vmatmul.mubr.f32.gmra.mrb[0].mxu0 %v128
  %v337 = vpop.f32.mrb[0].mxu0
  %v338 = vadd.f32 %v58, %v337
  %v339 = vpop.f32.mrb[0].mxu0
  %340 = vmatprep.mubr.f32.mxu0 0.0
  %341 = vmatmul.mubr.f32.gmra.mrb[0].mxu0 %v131
  %v342 = vpop.f32.mrb[0].mxu0
  %v343 = vadd.f32 %v58, %v342
  %v344 = vpop.f32.mrb[0].mxu0
  %345 = vmatprep.mubr.f32.mxu0 0.0
  %346 = vmatmul.mubr.f32.gmra.mrb[0].mxu0 %v134
  %v347 = vpop.f32.mrb[0].mxu0
  %v348 = vadd.f32 %v58, %v347
  %v349 = vpop.f32.mrb[0].mxu0
  %350 = vmatprep.mubr.f32.mxu0 0.0
  %351 = vmatmul.mubr.f32.gmra.mrb[0].mxu0 %v137
  %v352 = vpop.f32.mrb[0].mxu0
  %v353 = vadd.f32 %v58, %v352
  %v354 = vpop.f32.mrb[0].mxu0
  %355 = vmatprep.mubr.f32.mxu0 0.0
  %356 = vmatmul.mubr.f32.gmra.mrb[0].mxu0 %v140
  %v357 = vpop.f32.mrb[0].mxu0
  %v358 = vadd.f32 %v58, %v357
  %v359 = vpop.f32.mrb[0].mxu0
  %360 = vmatprep.mubr.f32.mxu0 0.0
  %361 = vmatmul.mubr.f32.gmra.mrb[0].mxu0 %v143
  %v362 = vpop.f32.mrb[0].mxu0
  %v363 = vadd.f32 %v58, %v362
  %v364 = vpop.f32.mrb[0].mxu0
  %365 = vmatprep.mubr.f32.mxu0 0.0
  %366 = vmatmul.mubr.f32.gmra.mrb[0].mxu0 %v146
  %v367 = vpop.f32.mrb[0].mxu0
  %v368 = vadd.f32 %v58, %v367
  %v369 = vpop.f32.mrb[0].mxu0
  %370 = vmatprep.mubr.f32.mxu0 0.0
  %371 = vmatmul.mubr.f32.gmra.mrb[0].mxu0 %v149
  %v372 = vpop.f32.mrb[0].mxu0
  %v373 = vadd.f32 %v58, %v372
  %v374 = vpop.f32.mrb[0].mxu0
  %375 = vmatprep.mubr.f32.mxu0 0.0
  %376 = vmatmul.mubr.f32.gmra.mrb[0].mxu0 %v152
  %v377 = vpop.f32.mrb[0].mxu0
  %v378 = vadd.f32 %v58, %v377
  %v379 = vpop.f32.mrb[0].mxu0
  %380 = vmatprep.mubr.f32.mxu0 0.0
  %381 = vmatmul.mubr.f32.gmra.mrb[0].mxu0 %v155
  %v382 = vpop.f32.mrb[0].mxu0
  %v383 = vadd.f32 %v58, %v382
  %v384 = vpop.f32.mrb[0].mxu0
  %385 = vdwg.mxu0
  %v386 = vmax.f32 %v228, 0.0
  %v387 = vmax.f32 %v233, 0.0
  %v388 = vmax.f32 %v238, 0.0
  %v389 = vmax.f32 %v243, 0.0
  %v390 = vmax.f32 %v248, 0.0
  %v391 = vmax.f32 %v253, 0.0
  %v392 = vmax.f32 %v258, 0.0
  %v393 = vmax.f32 %v263, 0.0
  %v394 = vmax.f32 %v268, 0.0
  %v395 = vmax.f32 %v273, 0.0
  %v396 = vmax.f32 %v278, 0.0
  %v397 = vmax.f32 %v283, 0.0
  %v398 = vmax.f32 %v288, 0.0
  %v399 = vmax.f32 %v293, 0.0
  %v400 = vmax.f32 %v298, 0.0
  %v401 = vmax.f32 %v303, 0.0
  %v402 = vmax.f32 %v308, 0.0
  %v403 = vmax.f32 %v313, 0.0
  %v404 = vmax.f32 %v318, 0.0
  %v405 = vmax.f32 %v323, 0.0
  %v406 = vmax.f32 %v328, 0.0
  %v407 = vmax.f32 %v333, 0.0
  %v408 = vmax.f32 %v338, 0.0
  %v409 = vmax.f32 %v343, 0.0
  %v410 = vmax.f32 %v348, 0.0
  %v411 = vmax.f32 %v353, 0.0
  %v412 = vmax.f32 %v358, 0.0
  %v413 = vmax.f32 %v363, 0.0
  %v414 = vmax.f32 %v368, 0.0
  %v415 = vmax.f32 %v373, 0.0
  %v416 = vmax.f32 %v378, 0.0
  %v417 = vmax.f32 %v383, 0.0
  %v418 = vld [vmem:[%s3] sm:$0xff]
  %v419 = vld [vmem:[%s3 + $0x8] sm:$0xff]
  %v420 = vld [vmem:[%s3 + $0x10] sm:$0xff]
  %v421 = vld [vmem:[%s3 + $0x18] sm:$0xff]
  %v422 = vld [vmem:[%s3 + $0x20] sm:$0xff]
  %v423 = vld [vmem:[%s3 + $0x28] sm:$0xff]
  %v424 = vld [vmem:[%s3 + $0x30] sm:$0xff]
  %v425 = vld [vmem:[%s3 + $0x38] sm:$0xff]
  %v426 = vld [vmem:[%s3 + $0x40] sm:$0xff]
  %v427 = vld [vmem:[%s3 + $0x48] sm:$0xff]
  %v428 = vld [vmem:[%s3 + $0x50] sm:$0xff]
  %v429 = vld [vmem:[%s3 + $0x58] sm:$0xff]
  %v430 = vld [vmem:[%s3 + $0x60] sm:$0xff]
  %v431 = vld [vmem:[%s3 + $0x68] sm:$0xff]
  %v432 = vld [vmem:[%s3 + $0x70] sm:$0xff]
  %v433 = vld [vmem:[%s3 + $0x78] sm:$0xff]
  %v434 = vld [vmem:[%s4] sm:$0x1]
  %v436 = vlaneseq
  %v437 = vshrl.u32 %v436, 7
  %v438 = vsub.s32 0, %v437
  %v439 = vrot.slane %v434, %v438
  %441 = vmatprep.subr.mxu0 0.0
  %442 = vmatpush1.msra.mxu0 %v418
  %443 = vmatprep.subr.mxu0 0.0
  %444 = vmatpush1.msra.mxu0 %v419
  %445 = vmatprep.subr.mxu0 0.0
  %446 = vmatpush1.msra.mxu0 %v420
  %447 = vmatprep.subr.mxu0 0.0
  %448 = vmatpush1.msra.mxu0 %v421
  %449 = vmatprep.subr.mxu0 0.0
  %450 = vmatpush1.msra.mxu0 %v422
  %451 = vmatprep.subr.mxu0 0.0
  %452 = vmatpush1.msra.mxu0 %v423
  %453 = vmatprep.subr.mxu0 0.0
  %454 = vmatpush1.msra.mxu0 %v424
  %455 = vmatprep.subr.mxu0 0.0
  %456 = vmatpush1.msra.mxu0 %v425
  %457 = vmatprep.subr.mxu0 0.0
  %458 = vmatpush1.msra.mxu0 %v426
  %459 = vmatprep.subr.mxu0 0.0
  %460 = vmatpush1.msra.mxu0 %v427
  %461 = vmatprep.subr.mxu0 0.0
  %462 = vmatpush1.msra.mxu0 %v428
  %463 = vmatprep.subr.mxu0 0.0
  %464 = vmatpush1.msra.mxu0 %v429
  %465 = vmatprep.subr.mxu0 0.0
  %466 = vmatpush1.msra.mxu0 %v430
  %467 = vmatprep.subr.mxu0 0.0
  %468 = vmatpush1.msra.mxu0 %v431
  %469 = vmatprep.subr.mxu0 0.0
  %470 = vmatpush1.msra.mxu0 %v432
  %471 = vmatprep.subr.mxu0 0.0
  %472 = vmatpush1.msra.mxu0 %v433
  %473 = vmatprep.subr.mxu0 0.0
  %474 = vmatpush1.msra.mxu0 0.0
  %475 = vmatprep.subr.mxu0 0.0
  %476 = vmatpush1.msra.mxu0 0.0
  %477 = vmatprep.subr.mxu0 0.0
  %478 = vmatpush1.msra.mxu0 0.0
  %479 = vmatprep.subr.mxu0 0.0
  %480 = vmatpush1.msra.mxu0 0.0
  %481 = vmatprep.subr.mxu0 0.0
  %482 = vmatpush1.msra.mxu0 0.0
  %483 = vmatprep.subr.mxu0 0.0
  %484 = vmatpush1.msra.mxu0 0.0
  %485 = vmatprep.subr.mxu0 0.0
  %486 = vmatpush1.msra.mxu0 0.0
  %487 = vmatprep.subr.mxu0 0.0
  %488 = vmatpush1.msra.mxu0 0.0
  %489 = vmatprep.subr.mxu0 0.0
  %490 = vmatpush1.msra.mxu0 0.0
  %491 = vmatprep.subr.mxu0 0.0
  %492 = vmatpush1.msra.mxu0 0.0
  %493 = vmatprep.subr.mxu0 0.0
  %494 = vmatpush1.msra.mxu0 0.0
  %495 = vmatprep.subr.mxu0 0.0
  %496 = vmatpush1.msra.mxu0 0.0
  %497 = vmatprep.subr.mxu0 0.0
  %498 = vmatpush1.msra.mxu0 0.0
  %499 = vmatprep.subr.mxu0 0.0
  %500 = vmatpush1.msra.mxu0 0.0
  %501 = vmatprep.subr.mxu0 0.0
  %502 = vmatpush1.msra.mxu0 0.0
  %503 = vmatprep.subr.mxu0 0.0
  %504 = vmatpush1.msra.mxu0 0.0
  %505 = vmatprep.mubr.f32.mxu0 0.0
  %506 = vmatmul.mubr.f32.gmra.mrb[0].mxu0 %v386
  %v507 = vpop.f32.mrb[0].mxu0
  %v508 = vadd.f32 %v439, %v507
  %v509 = vpop.f32.mrb[0].mxu0
  %510 = vmatprep.mubr.f32.mxu0 0.0
  %511 = vmatmul.mubr.f32.gmra.mrb[0].mxu0 %v387
  %v512 = vpop.f32.mrb[0].mxu0
  %v513 = vadd.f32 %v439, %v512
  %v514 = vpop.f32.mrb[0].mxu0
  %515 = vmatprep.mubr.f32.mxu0 0.0
  %516 = vmatmul.mubr.f32.gmra.mrb[0].mxu0 %v388
  %v517 = vpop.f32.mrb[0].mxu0
  %v518 = vadd.f32 %v439, %v517
  %v519 = vpop.f32.mrb[0].mxu0
  %520 = vmatprep.mubr.f32.mxu0 0.0
  %521 = vmatmul.mubr.f32.gmra.mrb[0].mxu0 %v389
  %v522 = vpop.f32.mrb[0].mxu0
  %v523 = vadd.f32 %v439, %v522
  %v524 = vpop.f32.mrb[0].mxu0
  %525 = vmatprep.mubr.f32.mxu0 0.0
  %526 = vmatmul.mubr.f32.gmra.mrb[0].mxu0 %v390
  %v527 = vpop.f32.mrb[0].mxu0
  %v528 = vadd.f32 %v439, %v527
  %v529 = vpop.f32.mrb[0].mxu0
  %530 = vmatprep.mubr.f32.mxu0 0.0
  %531 = vmatmul.mubr.f32.gmra.mrb[0].mxu0 %v391
  %v532 = vpop.f32.mrb[0].mxu0
  %v533 = vadd.f32 %v439, %v532
  %v534 = vpop.f32.mrb[0].mxu0
  %535 = vmatprep.mubr.f32.mxu0 0.0
  %536 = vmatmul.mubr.f32.gmra.mrb[0].mxu0 %v392
  %v537 = vpop.f32.mrb[0].mxu0
  %v538 = vadd.f32 %v439, %v537
  %v539 = vpop.f32.mrb[0].mxu0
  %540 = vmatprep.mubr.f32.mxu0 0.0
  %541 = vmatmul.mubr.f32.gmra.mrb[0].mxu0 %v393
  %v542 = vpop.f32.mrb[0].mxu0
  %v543 = vadd.f32 %v439, %v542
  %v544 = vpop.f32.mrb[0].mxu0
  %545 = vmatprep.mubr.f32.mxu0 0.0
  %546 = vmatmul.mubr.f32.gmra.mrb[0].mxu0 %v394
  %v547 = vpop.f32.mrb[0].mxu0
  %v548 = vadd.f32 %v439, %v547
  %v549 = vpop.f32.mrb[0].mxu0
  %550 = vmatprep.mubr.f32.mxu0 0.0
  %551 = vmatmul.mubr.f32.gmra.mrb[0].mxu0 %v395
  %v552 = vpop.f32.mrb[0].mxu0
  %v553 = vadd.f32 %v439, %v552
  %v554 = vpop.f32.mrb[0].mxu0
  %555 = vmatprep.mubr.f32.mxu0 0.0
  %556 = vmatmul.mubr.f32.gmra.mrb[0].mxu0 %v396
  %v557 = vpop.f32.mrb[0].mxu0
  %v558 = vadd.f32 %v439, %v557
  %v559 = vpop.f32.mrb[0].mxu0
  %560 = vmatprep.mubr.f32.mxu0 0.0
  %561 = vmatmul.mubr.f32.gmra.mrb[0].mxu0 %v397
  %v562 = vpop.f32.mrb[0].mxu0
  %v563 = vadd.f32 %v439, %v562
  %v564 = vpop.f32.mrb[0].mxu0
  %565 = vmatprep.mubr.f32.mxu0 0.0
  %566 = vmatmul.mubr.f32.gmra.mrb[0].mxu0 %v398
  %v567 = vpop.f32.mrb[0].mxu0
  %v568 = vadd.f32 %v439, %v567
  %v569 = vpop.f32.mrb[0].mxu0
  %570 = vmatprep.mubr.f32.mxu0 0.0
  %571 = vmatmul.mubr.f32.gmra.mrb[0].mxu0 %v399
  %v572 = vpop.f32.mrb[0].mxu0
  %v573 = vadd.f32 %v439, %v572
  %v574 = vpop.f32.mrb[0].mxu0
  %575 = vmatprep.mubr.f32.mxu0 0.0
  %576 = vmatmul.mubr.f32.gmra.mrb[0].mxu0 %v400
  %v577 = vpop.f32.mrb[0].mxu0
  %v578 = vadd.f32 %v439, %v577
  %v579 = vpop.f32.mrb[0].mxu0
  %580 = vmatprep.mubr.f32.mxu0 0.0
  %581 = vmatmul.mubr.f32.gmra.mrb[0].mxu0 %v401
  %v582 = vpop.f32.mrb[0].mxu0
  %v583 = vadd.f32 %v439, %v582
  %v584 = vpop.f32.mrb[0].mxu0
  %585 = vmatprep.mubr.f32.mxu0 0.0
  %586 = vmatmul.mubr.f32.gmra.mrb[0].mxu0 %v402
  %v587 = vpop.f32.mrb[0].mxu0
  %v588 = vadd.f32 %v439, %v587
  %v589 = vpop.f32.mrb[0].mxu0
  %590 = vmatprep.mubr.f32.mxu0 0.0
  %591 = vmatmul.mubr.f32.gmra.mrb[0].mxu0 %v403
  %v592 = vpop.f32.mrb[0].mxu0
  %v593 = vadd.f32 %v439, %v592
  %v594 = vpop.f32.mrb[0].mxu0
  %595 = vmatprep.mubr.f32.mxu0 0.0
  %596 = vmatmul.mubr.f32.gmra.mrb[0].mxu0 %v404
  %v597 = vpop.f32.mrb[0].mxu0
  %v598 = vadd.f32 %v439, %v597
  %v599 = vpop.f32.mrb[0].mxu0
  %600 = vmatprep.mubr.f32.mxu0 0.0
  %601 = vmatmul.mubr.f32.gmra.mrb[0].mxu0 %v405
  %v602 = vpop.f32.mrb[0].mxu0
  %v603 = vadd.f32 %v439, %v602
  %v604 = vpop.f32.mrb[0].mxu0
  %605 = vmatprep.mubr.f32.mxu0 0.0
  %606 = vmatmul.mubr.f32.gmra.mrb[0].mxu0 %v406
  %v607 = vpop.f32.mrb[0].mxu0
  %v608 = vadd.f32 %v439, %v607
  %v609 = vpop.f32.mrb[0].mxu0
  %610 = vmatprep.mubr.f32.mxu0 0.0
  %611 = vmatmul.mubr.f32.gmra.mrb[0].mxu0 %v407
  %v612 = vpop.f32.mrb[0].mxu0
  %v613 = vadd.f32 %v439, %v612
  %v614 = vpop.f32.mrb[0].mxu0
  %615 = vmatprep.mubr.f32.mxu0 0.0
  %616 = vmatmul.mubr.f32.gmra.mrb[0].mxu0 %v408
  %v617 = vpop.f32.mrb[0].mxu0
  %v618 = vadd.f32 %v439, %v617
  %v619 = vpop.f32.mrb[0].mxu0
  %620 = vmatprep.mubr.f32.mxu0 0.0
  %621 = vmatmul.mubr.f32.gmra.mrb[0].mxu0 %v409
  %v622 = vpop.f32.mrb[0].mxu0
  %v623 = vadd.f32 %v439, %v622
  %v624 = vpop.f32.mrb[0].mxu0
  %625 = vmatprep.mubr.f32.mxu0 0.0
  %626 = vmatmul.mubr.f32.gmra.mrb[0].mxu0 %v410
  %v627 = vpop.f32.mrb[0].mxu0
  %v628 = vadd.f32 %v439, %v627
  %v629 = vpop.f32.mrb[0].mxu0
  %630 = vmatprep.mubr.f32.mxu0 0.0
  %631 = vmatmul.mubr.f32.gmra.mrb[0].mxu0 %v411
  %v632 = vpop.f32.mrb[0].mxu0
  %v633 = vadd.f32 %v439, %v632
  %v634 = vpop.f32.mrb[0].mxu0
  %635 = vmatprep.mubr.f32.mxu0 0.0
  %636 = vmatmul.mubr.f32.gmra.mrb[0].mxu0 %v412
  %v637 = vpop.f32.mrb[0].mxu0
  %v638 = vadd.f32 %v439, %v637
  %v639 = vpop.f32.mrb[0].mxu0
  %640 = vmatprep.mubr.f32.mxu0 0.0
  %641 = vmatmul.mubr.f32.gmra.mrb[0].mxu0 %v413
  %v642 = vpop.f32.mrb[0].mxu0
  %v643 = vadd.f32 %v439, %v642
  %v644 = vpop.f32.mrb[0].mxu0
  %645 = vmatprep.mubr.f32.mxu0 0.0
  %646 = vmatmul.mubr.f32.gmra.mrb[0].mxu0 %v414
  %v647 = vpop.f32.mrb[0].mxu0
  %v648 = vadd.f32 %v439, %v647
  %v649 = vpop.f32.mrb[0].mxu0
  %650 = vmatprep.mubr.f32.mxu0 0.0
  %651 = vmatmul.mubr.f32.gmra.mrb[0].mxu0 %v415
  %v652 = vpop.f32.mrb[0].mxu0
  %v653 = vadd.f32 %v439, %v652
  %v654 = vpop.f32.mrb[0].mxu0
  %655 = vmatprep.mubr.f32.mxu0 0.0
  %656 = vmatmul.mubr.f32.gmra.mrb[0].mxu0 %v416
  %v657 = vpop.f32.mrb[0].mxu0
  %v658 = vadd.f32 %v439, %v657
  %v659 = vpop.f32.mrb[0].mxu0
  %660 = vmatprep.mubr.f32.mxu0 0.0
  %661 = vmatmul.mubr.f32.gmra.mrb[0].mxu0 %v417
  %v662 = vpop.f32.mrb[0].mxu0
  %v663 = vadd.f32 %v439, %v662
  %v664 = vpop.f32.mrb[0].mxu0
  %665 = vdwg.mxu0
  %vm666 = vcmask 23552
  %667 = vst.msk [vmem:[%s5] sm:$0xff] %vm666, %v508
  %668 = vst.msk [vmem:[%s5 + $0x8] sm:$0xff] %vm666, %v513
  %669 = vst.msk [vmem:[%s5 + $0x10] sm:$0xff] %vm666, %v518
  %670 = vst.msk [vmem:[%s5 + $0x18] sm:$0xff] %vm666, %v523
  %671 = vst.msk [vmem:[%s5 + $0x20] sm:$0xff] %vm666, %v528
  %672 = vst.msk [vmem:[%s5 + $0x28] sm:$0xff] %vm666, %v533
  %673 = vst.msk [vmem:[%s5 + $0x30] sm:$0xff] %vm666, %v538
  %674 = vst.msk [vmem:[%s5 + $0x38] sm:$0xff] %vm666, %v543
  %675 = vst.msk [vmem:[%s5 + $0x40] sm:$0xff] %vm666, %v548
  %676 = vst.msk [vmem:[%s5 + $0x48] sm:$0xff] %vm666, %v553
  %677 = vst.msk [vmem:[%s5 + $0x50] sm:$0xff] %vm666, %v558
  %678 = vst.msk [vmem:[%s5 + $0x58] sm:$0xff] %vm666, %v563
  %679 = vst.msk [vmem:[%s5 + $0x60] sm:$0xff] %vm666, %v568
  %680 = vst.msk [vmem:[%s5 + $0x68] sm:$0xff] %vm666, %v573
  %681 = vst.msk [vmem:[%s5 + $0x70] sm:$0xff] %vm666, %v578
  %682 = vst.msk [vmem:[%s5 + $0x78] sm:$0xff] %vm666, %v583
  %683 = vst.msk [vmem:[%s5 + $0x80] sm:$0xff] %vm666, %v588
  %684 = vst.msk [vmem:[%s5 + $0x88] sm:$0xff] %vm666, %v593
  %685 = vst.msk [vmem:[%s5 + $0x90] sm:$0xff] %vm666, %v598
  %686 = vst.msk [vmem:[%s5 + $0x98] sm:$0xff] %vm666, %v603
  %687 = vst.msk [vmem:[%s5 + $0xa0] sm:$0xff] %vm666, %v608
  %688 = vst.msk [vmem:[%s5 + $0xa8] sm:$0xff] %vm666, %v613
  %689 = vst.msk [vmem:[%s5 + $0xb0] sm:$0xff] %vm666, %v618
  %690 = vst.msk [vmem:[%s5 + $0xb8] sm:$0xff] %vm666, %v623
  %691 = vst.msk [vmem:[%s5 + $0xc0] sm:$0xff] %vm666, %v628
  %692 = vst.msk [vmem:[%s5 + $0xc8] sm:$0xff] %vm666, %v633
  %693 = vst.msk [vmem:[%s5 + $0xd0] sm:$0xff] %vm666, %v638
  %694 = vst.msk [vmem:[%s5 + $0xd8] sm:$0xff] %vm666, %v643
  %695 = vst.msk [vmem:[%s5 + $0xe0] sm:$0xff] %vm666, %v648
  %696 = vst.msk [vmem:[%s5 + $0xe8] sm:$0xff] %vm666, %v653
  %697 = vst.msk [vmem:[%s5 + $0xf0] sm:$0xff] %vm666, %v658
  %698 = vst.msk [vmem:[%s5 + $0xf8] sm:$0xff] %vm666, %v663
  // Predicated region
  $region22: #{network_forward.1} parent=0 // pred_check
    _
  $region23: #{network_forward.1} parent=0 // pred_check_branch
    %700 = sbr.rel (0) target = $region25
  $region24: #{network_forward.1} parent=0 // pred_region
    _
  $region25: #{network_forward.1} parent=0 // pred_fallthru
    _
  // Predicated region
  $region26: #{network_forward.1} parent=0 // pred_check
    _
  $region27: #{network_forward.1} parent=0 // pred_check_branch
    %702 = sbr.rel (0) target = $region29
  $region28: #{network_forward.1} parent=0 // pred_region
    _
  $region29: #{network_forward.1} parent=0 // pred_fallthru
    _

</llo_original>
